<compile_context>
chip_gen: v7x
topology: tpu7x:2x2x1
jax: 0.10.0
libtpu: 0.0.40
codegen_flags: <defaults>
</compile_context>

<pallas_src>
import functools

import jax
import jax.numpy as jnp
import numpy as np
from jax.experimental import pallas as pl
from jax.experimental.pallas import tpu as pltpu

_VMEM = pl.BlockSpec(memory_space=pltpu.MemorySpace.VMEM)

# --------------------------------------------------------------------------- #
# pltpu.roll direction probe (one-shot, cached)
# --------------------------------------------------------------------------- #
_ROLL_SIGN_CACHE = []


def _roll_sign():
    """Pin pltpu.roll's rotation direction with a tiny probe kernel.

    The fused kernel needs shifted[r] = x[(r + delta) % R].  With jnp.roll-style
    semantics that is shift = -delta; probing the actual op makes the kernel
    immune to a convention flip across jax / Mosaic versions.
    """
    if not _ROLL_SIGN_CACHE:
        def probe_kernel(x_ref, o_ref):
            o_ref[...] = pltpu.roll(x_ref[...], 1, 0)

        x = jax.lax.broadcasted_iota(jnp.float32, (8, 128), 0)  # row index
        y = pl.pallas_call(
            probe_kernel,
            out_shape=jax.ShapeDtypeStruct((8, 128), jnp.float32),
            in_specs=[_VMEM],
            out_specs=_VMEM,
        )(x)
        # jnp.roll convention -> out[0] == 7 ; flipped convention -> out[0] == 1
        _ROLL_SIGN_CACHE.append(-1 if int(round(float(y[0, 0]))) == 7 else 1)
    return _ROLL_SIGN_CACHE[0]


def _shift_rows(x, delta):
    """shifted[r] = x[(r + delta) % R].  Wrapped rows are masked by callers."""
    if delta == 0:
        return x
    rows = x.shape[0]
    return pltpu.roll(x, (_roll_sign() * delta) % rows, 0)


# --------------------------------------------------------------------------- #
# In-kernel helpers (all operate on lane-dense (B*H*W, C) f32 values)
# --------------------------------------------------------------------------- #
def _downsample_select(batch, H, W):
    """(B*(H//2)*(W//2), B*H*W) 0/1 matrix selecting rows at (2*ho, 2*wo)."""
    Ho, Wo = H // 2, W // 2
    Ro, Ri = batch * Ho * Wo, batch * H * W
    ro = jax.lax.broadcasted_iota(jnp.int32, (Ro, Ri), 0)
    ri = jax.lax.broadcasted_iota(jnp.int32, (Ro, Ri), 1)
    b = ro // (Ho * Wo)
    ho = (ro // Wo) % Ho
    wo = ro % Wo
    src = b * (H * W) + (2 * ho) * W + 2 * wo
    return (ri == src).astype(jnp.float32)


def _batch_agg(batch, rows_per_image):
    """(B, B*R) 0/1 matrix: sums rows of one image into its batch slot."""
    rows = batch * rows_per_image
    b = jax.lax.broadcasted_iota(jnp.int32, (batch, rows), 0)
    r = jax.lax.broadcasted_iota(jnp.int32, (batch, rows), 1)
    return (r // rows_per_image == b).astype(jnp.float32)


def _batch_bcast(batch, rows_per_image):
    """(B*R, B) 0/1 matrix: broadcasts a per-batch row back to all its rows."""
    rows = batch * rows_per_image
    r = jax.lax.broadcasted_iota(jnp.int32, (rows, batch), 0)
    b = jax.lax.broadcasted_iota(jnp.int32, (rows, batch), 1)
    return (r // rows_per_image == b).astype(jnp.float32)


def _group_mat(C, G):
    """(C, G) 0/1 channel -> group membership matrix."""
    c = jax.lax.broadcasted_iota(jnp.int32, (C, G), 0)
    g = jax.lax.broadcasted_iota(jnp.int32, (C, G), 1)
    return (c // (C // G) == g).astype(jnp.float32)


def _group_bcast(C, G):
    """(G, C) 0/1 group -> channel broadcast matrix."""
    g = jax.lax.broadcasted_iota(jnp.int32, (G, C), 0)
    c = jax.lax.broadcasted_iota(jnp.int32, (G, C), 1)
    return (c // (C // G) == g).astype(jnp.float32)


def _conv3x3(z, w9_ref, H, W):
    """3x3, stride-1, pad-1 conv on a (B*H*W, Cin) f32 map.

    9 taps: roll rows by (dy-1)*W + (dx-1), zero out-of-image rows with an
    iota-derived mask, then a bf16 MXU matmul against w9_ref[k] : (Cin, Cout),
    accumulated in f32.  Returns (B*H*W, Cout) f32 (no bias / activation).
    """
    rows = z.shape[0]
    cout = w9_ref.shape[2]
    r = jax.lax.broadcasted_iota(jnp.int32, (rows, 1), 0)
    h = (r // W) % H
    w = r % W
    acc = jnp.zeros((rows, cout), jnp.float32)
    for k in range(9):
        dy, dx = k // 3 - 1, k % 3 - 1
        src = _shift_rows(z, dy * W + dx)
        inside = ((h + dy >= 0) & (h + dy < H) & (w + dx >= 0) & (w + dx < W))
        src = src * inside.astype(src.dtype)            # kill wrapped / OOB rows
        acc = acc + jnp.dot(src.astype(jnp.bfloat16), w9_ref[k],
                            preferred_element_type=jnp.float32)
    return acc


def _groupnorm(y, batch, rows_per_image, groups, gamma, beta, eps=1e-5):
    """GroupNorm on a (B*R, C) map: exact 0/1 aggregation matmuls, two-pass."""
    f32 = jnp.float32
    C = y.shape[1]
    A = _batch_agg(batch, rows_per_image)           # (B, B*R)
    At = _batch_bcast(batch, rows_per_image)        # (B*R, B)
    M = _group_mat(C, groups)                       # (C, G)
    Mt = _group_bcast(C, groups)                    # (G, C)
    count = float(rows_per_image * (C // groups))

    mean_g = jnp.dot(jnp.dot(A, y, preferred_element_type=f32), M,
                     preferred_element_type=f32) / count            # (B, G)
    mean_r = jnp.dot(At, jnp.dot(mean_g, Mt, preferred_element_type=f32),
                     preferred_element_type=f32)                    # (B*R, C)
    d = y - mean_r
    var_g = jnp.dot(jnp.dot(A, d * d, preferred_element_type=f32), M,
                    preferred_element_type=f32) / count             # (B, G)
    inv_r = jnp.dot(At, jnp.dot(jax.lax.rsqrt(var_g + eps), Mt,
                                preferred_element_type=f32),
                    preferred_element_type=f32)                     # (B*R, C)
    return d * inv_r * gamma + beta


def _maxpool2x2(y, batch, H, W):
    """2x2/2 max pool on a (B*H*W, C) map: 3 rolls + max, then selection matmul."""
    p = y
    for off in (1, W, W + 1):
        p = jnp.maximum(p, _shift_rows(y, off))
    sel = _downsample_select(batch, H, W)
    return jnp.dot(sel, p, preferred_element_type=jnp.float32)


# --------------------------------------------------------------------------- #
# The fused kernel
# --------------------------------------------------------------------------- #
def _fused_cifar_kernel(x_ref, w1_ref, b1_ref, g1_ref, be1_ref,
                        w2_ref, b2_ref, g2_ref, be2_ref,
                        w3_ref, b3_ref, g3_ref, be3_ref,
                        wl1_ref, bl1_ref, wc_ref, bc_ref,
                        feat_ref, logit_ref, *, batch):
    f32, bf16 = jnp.float32, jnp.bfloat16

    # ---- stage 1: conv1(3->64, s1) + ReLU + GN(8,64) + maxpool  (16x16 -> 8x8)
    y = _conv3x3(x_ref[...], w1_ref, H=16, W=16) + b1_ref[...]       # (B*256, 64)
    y = jnp.maximum(y, 0.0)
    y = _groupnorm(y, batch, rows_per_image=256, groups=8,
                   gamma=g1_ref[...], beta=be1_ref[...])
    z = _maxpool2x2(y, batch, H=16, W=16)                            # (B*64, 64)

    # ---- stage 2: conv2(64->128, s2) + ReLU + GN(8,128) + maxpool (8x8->4x4->2x2)
    # stride-2 conv = stride-1 conv at every position, then even/even subsample
    y = _conv3x3(z, w2_ref, H=8, W=8) + b2_ref[...]                  # (B*64, 128)
    y = jnp.dot(_downsample_select(batch, 8, 8), y,
                preferred_element_type=f32)                          # (B*16, 128)
    y = jnp.maximum(y, 0.0)
    y = _groupnorm(y, batch, rows_per_image=16, groups=8,
                   gamma=g2_ref[...], beta=be2_ref[...])
    z = _maxpool2x2(y, batch, H=4, W=4)                              # (B*4, 128)

    # ---- stage 3: conv3(128->128, s1) + ReLU + GN(8,128) + maxpool (2x2 -> 1x1)
    y = _conv3x3(z, w3_ref, H=2, W=2) + b3_ref[...]                  # (B*4, 128)
    y = jnp.maximum(y, 0.0)
    y = _groupnorm(y, batch, rows_per_image=4, groups=8,
                   gamma=g3_ref[...], beta=be3_ref[...])
    z = _maxpool2x2(y, batch, H=2, W=2)                              # (B, 128)

    # ---- heads: lin1 then classifier (padded to 128 lanes, sliced outside)
    feats = jnp.dot(z.astype(bf16), wl1_ref[...],
                    preferred_element_type=f32) + bl1_ref[...]       # (B, 128)
    feat_ref[...] = feats
    logit_ref[...] = jnp.dot(feats.astype(bf16), wc_ref[...],
                             preferred_element_type=f32) + bc_ref[...]


# --------------------------------------------------------------------------- #
# Host-side parameter prep and wrapper
# --------------------------------------------------------------------------- #
def prepare_params(p):
    """Reshape / cast PyTorch-layout params for the fused kernel (runs once)."""
    bf16, f32 = jnp.bfloat16, jnp.float32

    def conv_taps(w):   # (Cout, Cin, 3, 3) -> (9, Cin, Cout), tap k = dy*3+dx
        cout, cin = w.shape[0], w.shape[1]
        return jnp.transpose(w, (2, 3, 1, 0)).reshape(9, cin, cout)

    def row(v):
        return v.reshape(1, -1).astype(f32)

    w1 = jnp.pad(conv_taps(p["conv1_w"]), ((0, 0), (0, 5), (0, 0)))  # Cin 3->8
    wc = jnp.pad(p["cls_w"].T, ((0, 0), (0, 118)))                   # 10 -> 128 lanes
    bc = jnp.pad(p["cls_b"], (0, 118))

    return (
        w1.astype(bf16), row(p["conv1_b"]), row(p["bn1_g"]), row(p["bn1_b"]),
        conv_taps(p["conv2_w"]).astype(bf16), row(p["conv2_b"]),
        row(p["bn2_g"]), row(p["bn2_b"]),
        conv_taps(p["conv3_w"]).astype(bf16), row(p["conv3_b"]),
        row(p["bn3_g"]), row(p["bn3_b"]),
        p["lin1_w"].T.astype(bf16), row(p["lin1_b"]),
        wc.astype(bf16), row(bc),
    )


def build_forward(prep, batch):
    """Returns forward(x_nchw) -> (features (B,128), logits (B,10))."""
    n_in = 1 + len(prep)
    call = pl.pallas_call(
        functools.partial(_fused_cifar_kernel, batch=batch),
        out_shape=(jax.ShapeDtypeStruct((batch, 128), jnp.float32),
                   jax.ShapeDtypeStruct((batch, 128), jnp.float32)),
        in_specs=[_VMEM] * n_in,
        out_specs=(_VMEM, _VMEM),
    )
    # TODO(synk): for large batch, add a grid over the row dim with BlockSpec
    # tiles and dimension_semantics=("parallel",) so work shards across v7x's
    # two TensorCores and stays within per-generation VMEM limits.

    def forward(x_nchw):
        B, C, H, W = x_nchw.shape
        x2d = jnp.transpose(x_nchw, (0, 2, 3, 1)).reshape(B * H * W, C)
        x2d = jnp.pad(x2d, ((0, 0), (0, 8 - C)))        # lane-pad Cin 3 -> 8
        feats, logits_pad = call(x2d, *prep)
        return feats, logits_pad[:, :10]

    return forward


# --------------------------- params & jnp reference ------------------------- #
def init_params(key):
    ks = jax.random.split(key, 8)

    def conv_init(k, cout, cin, ksz):
        bound = 1.0 / np.sqrt(cin * ksz * ksz)
        kw, kb = jax.random.split(k)
        w = jax.random.uniform(kw, (cout, cin, ksz, ksz), jnp.float32, -bound, bound)
        b = jax.random.uniform(kb, (cout,), jnp.float32, -bound, bound)
        return w, b

    def lin_init(k, cout, cin):
        bound = 1.0 / np.sqrt(cin)
        kw, kb = jax.random.split(k)
        w = jax.random.uniform(kw, (cout, cin), jnp.float32, -bound, bound)
        b = jax.random.uniform(kb, (cout,), jnp.float32, -bound, bound)
        return w, b

    p = {}
    p["conv1_w"], p["conv1_b"] = conv_init(ks[0], 64, 3, 3)
    p["conv2_w"], p["conv2_b"] = conv_init(ks[1], 128, 64, 3)
    p["conv3_w"], p["conv3_b"] = conv_init(ks[2], 128, 128, 3)
    for i, (name, c) in enumerate((("bn1", 64), ("bn2", 128), ("bn3", 128))):
        kg, kb = jax.random.split(ks[3 + i])
        p[name + "_g"] = 1.0 + 0.1 * jax.random.normal(kg, (c,), jnp.float32)
        p[name + "_b"] = 0.1 * jax.random.normal(kb, (c,), jnp.float32)
    p["lin1_w"], p["lin1_b"] = lin_init(ks[6], 128, 128)
    p["cls_w"], p["cls_b"] = lin_init(ks[7], 10, 128)
    return p


def ref_forward(x, p):
    """Plain-JAX (NCHW) reference mirroring the PyTorch forward."""
    def conv(x, w, b, stride):
        y = jax.lax.conv_general_dilated(
            x, w, window_strides=(stride, stride), padding=((1, 1), (1, 1)),
            dimension_numbers=("NCHW", "OIHW", "NCHW"))
        return y + b[None, :, None, None]

    def gn(x, g, bta, G, eps=1e-5):
        B, C, H, W = x.shape
        xr = x.reshape(B, G, -1)
        m = xr.mean(axis=2, keepdims=True)
        v = xr.var(axis=2, keepdims=True)
        xn = ((xr - m) / jnp.sqrt(v + eps)).reshape(B, C, H, W)
        return xn * g[None, :, None, None] + bta[None, :, None, None]

    def mp(x):
        B, C, H, W = x.shape
        return x.reshape(B, C, H // 2, 2, W // 2, 2).max(axis=(3, 5))

    x = mp(gn(jax.nn.relu(conv(x, p["conv1_w"], p["conv1_b"], 1)), p["bn1_g"], p["bn1_b"], 8))
    x = mp(gn(jax.nn.relu(conv(x, p["conv2_w"], p["conv2_b"], 2)), p["bn2_g"], p["bn2_b"], 8))
    x = mp(gn(jax.nn.relu(conv(x, p["conv3_w"], p["conv3_b"], 1)), p["bn3_g"], p["bn3_b"], 8))
    f = x.reshape(x.shape[0], -1) @ p["lin1_w"].T + p["lin1_b"]
    l = f @ p["cls_w"].T + p["cls_b"]
    return f, l


# ----------------------------------- main ----------------------------------- #
if __name__ == "__main__":
    _roll_sign()  # run the one-shot roll-direction probe before building the kernel

    key = jax.random.PRNGKey(0)
    pkey, xkey = jax.random.split(key)
    params = init_params(pkey)
    # PyTorch-style NCHW input; 16x16 spatial so the flatten yields 128 features.
    x = jax.random.normal(xkey, (2, 3, 16, 16), jnp.float32)

    prep = prepare_params(params)
    fwd = jax.jit(build_forward(prep, batch=2))
    features, logits = jax.block_until_ready(fwd(x))

    assert features.shape == (2, 128) and logits.shape == (2, 10)
    assert bool(jnp.all(jnp.isfinite(features))) and bool(jnp.all(jnp.isfinite(logits)))

    f_ref, l_ref = ref_forward(x, params)
    np.testing.assert_allclose(np.asarray(features), np.asarray(f_ref), atol=5e-2, rtol=5e-2)
    np.testing.assert_allclose(np.asarray(logits), np.asarray(l_ref), atol=5e-2, rtol=5e-2)

    print("KERNEL_OK")
</pallas_src>

<mosaic_0001>
module attributes {stable_mosaic.version = 11 : i64} {
  func.func @probe_kernel(%arg0: memref<8x128xf32, #tpu.memory_space<vmem>>, %arg1: memref<8x128xf32, #tpu.memory_space<vmem>>) attributes {dimension_semantics = [], scalar_prefetch = 0 : i64, scratch_operands = 0 : i64, tpu.core_type = #tpu.core_type<tc>} {
    %c0 = arith.constant 0 : index
    %c0_0 = arith.constant 0 : index
    %0 = vector.load %arg0[%c0, %c0_0] : memref<8x128xf32, #tpu.memory_space<vmem>>, vector<8x128xf32>
    %c1_i32 = arith.constant 1 : i32
    %1 = tpu.dynamic_rotate %0 by %c1_i32 dim 0 : vector<8x128xf32>, i32 -> vector<8x128xf32>
    %c0_1 = arith.constant 0 : index
    %c0_2 = arith.constant 0 : index
    %2 = vector.load %arg1[%c0_1, %c0_2] : memref<8x128xf32, #tpu.memory_space<vmem>>, vector<8x128xf32>
    tpu.vector_store %arg1[%c0_1, %c0_2], %1 {strides = array<i32>} : memref<8x128xf32, #tpu.memory_space<vmem>>, vector<8x128xf32>,
    return
  }
}

</mosaic_0001>

<llo_original>
// kernel: tpu_custom_call.1
$region0: #{tpu_custom_call.1}
  #allocation0 [shape = 'u32[]', space=smem, size = 0x4, offset = 0x4, fixed_abs, tag = 'smem constant byte address 0x4 - core index']
  #allocation1 [shape = 'u32[144,128]{1,0:T(1,128)}', space=vmem, size = 0x12000, scoped, tag = 'internal scratch']
  %s0 = inlined_call_operand.hbm [shape: f32[8,128], index: 0, kind: input, shape index: {}]
  %s1 = inlined_call_operand.hbm [shape: f32[8,128], index: 1, kind: output, shape index: {}]
  %s2 = sld [smem:[#allocation0]]
  $region18: #{tpu_custom_call.1} parent=0
    _
  %s4 = ssub.s32 1, %s2
  %s5 = scalar_select 0, %s4, %s2
  $region1: #{tpu_custom_call.1} parent=0
    #allocation2 [shape = 'u8[4096]{0}', space=vmem, size = 0x1000, scoped, tag = 'input window, operand 0, single buffered']
    #allocation3 [shape = 's32[1]{0}', space=sflag, size = 0x4, scoped, tag = 'scoped memory for tpu_custom_call.1']
    #allocation4 [shape = 's32[1]{0}', space=sflag, size = 0x4, scoped, tag = 'scoped memory for tpu_custom_call.1']
    #allocation5 [shape = 'u8[4096]{0}', space=vmem, size = 0x1000, scoped, tag = 'output window, operand 0, single buffered']
    %6 = vsyncpa [#allocation3], 0
    %7 = vsyncpa [#allocation4], 0
    // Predicated region
    $region2: #{tpu_custom_call.1} parent=1 // pred_check
      _
    $region3: #{tpu_custom_call.1} parent=1 // pred_check_branch
      %9 = sbr.rel (0) target = $region5
    $region4: #{tpu_custom_call.1} parent=1 // pred_region
      %s11 = ssub.s32 128, 128
      %12 = vsyncadd [#allocation3], %s11
      %s14 = sshll.u32 [#allocation2], 4
      %s15 = int_to_ptr.vmem [resolvable:$true] %s14
      %17 = dma.hbm_to_vmem [thread:$0]  %s0, 128, %s15, [#allocation3]
    $region5: #{tpu_custom_call.1} parent=1 // pred_fallthru
      _
    // Predicated region
    $region6: #{tpu_custom_call.1} parent=1 // pred_check
      _
    $region7: #{tpu_custom_call.1} parent=1 // pred_check_branch
      %19 = sbr.rel (0) target = $region9
    $region8: #{tpu_custom_call.1} parent=1 // pred_region
      %20 = dma.done [#allocation3], 128
    $region9: #{tpu_custom_call.1} parent=1 // pred_fallthru
      _
    %v21 = vld [vmem:[#allocation2] sm:$0xff]
    %v22 = vrot.slane %v21, 7
    %23 = vst [vmem:[#allocation5] sm:$0xff] %v22
    // Predicated region
    $region10: #{tpu_custom_call.1} parent=1 // pred_check
      _
    $region11: #{tpu_custom_call.1} parent=1 // pred_check_branch
      %25 = sbr.rel (0) target = $region13
    $region12: #{tpu_custom_call.1} parent=1 // pred_region
      %s27 = ssub.s32 128, 128
      %28 = vsyncadd [#allocation4], %s27
      %s30 = sshll.u32 [#allocation5], 4
      %s31 = int_to_ptr.vmem [resolvable:$true] %s30
      %33 = dma.vmem_to_hbm [thread:$0]  %s31, 128, %s1, [#allocation4]
    $region13: #{tpu_custom_call.1} parent=1 // pred_fallthru
      _
    // Predicated region
    $region14: #{tpu_custom_call.1} parent=1 // pred_check
      _
    $region15: #{tpu_custom_call.1} parent=1 // pred_check_branch
      %35 = sbr.rel (0) target = $region17
    $region16: #{tpu_custom_call.1} parent=1 // pred_region
      %36 = dma.done [#allocation4], 128
    $region17: #{tpu_custom_call.1} parent=1 // pred_fallthru
      _
    %37 = vsyncpa [#allocation3], 1
    %38 = vsyncpa [#allocation4], 1

</llo_original>
